<compile_context>
chip_gen: v7x
topology: tpu7x:2x2x1
jax: 0.10.0
libtpu: 0.0.40
codegen_flags: <defaults>
</compile_context>

<pallas_src>
import functools

import jax
import jax.numpy as jnp
from jax.experimental import pallas as pl
from jax.experimental.pallas import tpu as pltpu

NEG_SLOPE = 0.01      # torch.nn.functional.leaky_relu default
LANE = 128            # lane-dim tiling unit


def _leaky_relu(x):
    return jnp.where(x > 0, x, NEG_SLOPE * x)


def _round_up(x, m):
    return (x + m - 1) // m * m


def xornet_kernel(p_ref, x_ref, o_ref):
    # p_ref: (16,) f32 in SMEM:
    #   [W1_00, W1_01, W1_10, W1_11, b1_0, b1_1, W2_0, W2_1, b2, 0...]
    #   (W1 stored (in, out): W1_ij = weight from input feature i to hidden j)
    # x_ref: (2, tile) f32 in VMEM: row 0 = feature 0, row 1 = feature 1
    # o_ref: (1, tile) f32 in VMEM: lane-dense outputs (one per batch element)
    x0 = x_ref[0:1, :]                     # (1, tile)
    x1 = x_ref[1:2, :]                     # (1, tile)

    # Layer 1: h_j = leaky_relu(x0 * W1[0,j] + x1 * W1[1,j] + b1[j])
    h0 = _leaky_relu(p_ref[0] * x0 + p_ref[2] * x1 + p_ref[4])
    h1 = _leaky_relu(p_ref[1] * x0 + p_ref[3] * x1 + p_ref[5])

    # Layer 2: y = leaky_relu(h0 * W2[0] + h1 * W2[1] + b2)
    y = _leaky_relu(p_ref[6] * h0 + p_ref[7] * h1 + p_ref[8])

    o_ref[...] = y.astype(o_ref.dtype)


def pack_params(w1, b1, w2, b2):
    """Pack (in,out)-layout weights into one (16,) f32 scalar vector. Call once."""
    pad = jnp.zeros((7,), jnp.float32)
    return jnp.concatenate([
        w1.astype(jnp.float32).reshape(-1),    # W1_00, W1_01, W1_10, W1_11
        b1.astype(jnp.float32).reshape(-1),    # b1_0, b1_1
        w2.astype(jnp.float32).reshape(-1),    # W2_0, W2_1
        b2.astype(jnp.float32).reshape(-1),    # b2
        pad,
    ])


@functools.partial(jax.jit, static_argnames=("tile_n",))
def xornet_forward(x, params, *, tile_n=16384):
    """x: (N, 2) f32; params: (16,) from pack_params(). Returns (N, 1) f32."""
    n, f = x.shape
    assert f == 2, "XORNet expects 2 input features"

    # Lane-dim tile: multiple of 128, at most tile_n, at most the padded batch.
    np_min = _round_up(n, LANE)
    tn = min(_round_up(tile_n, LANE), np_min)
    # v7x megacore: allow >=2 parallel grid steps when the batch is big enough.
    if np_min >= 2 * LANE:
        tn = min(tn, _round_up(pl.cdiv(np_min, 2), LANE))
    np_ = _round_up(n, tn)
    grid = (np_ // tn,)

    # Feature-major, lane-dense input slab (only per-call padding needed).
    x_p = jnp.pad(x.astype(jnp.float32).T, ((0, 0), (0, np_ - n)))   # (2, Np)

    flops = 16 * np_                                   # ~8 FMA-ish + 3 selects / elem
    bytes_accessed = (2 * np_ + np_ + params.size) * 4  # in + out + scalars

    y_p = pl.pallas_call(
        xornet_kernel,
        out_shape=jax.ShapeDtypeStruct((1, np_), jnp.float32),
        grid=grid,
        in_specs=[
            pl.BlockSpec(memory_space=pltpu.MemorySpace.SMEM),   # params -> SMEM scalars
            pl.BlockSpec((2, tn), lambda i: (0, i)),             # x slab tile
        ],
        out_specs=pl.BlockSpec((1, tn), lambda i: (0, i)),       # lane-dense output
        compiler_params=pltpu.CompilerParams(
            dimension_semantics=("parallel",)),
        cost_estimate=pl.CostEstimate(
            flops=flops, transcendentals=0, bytes_accessed=bytes_accessed),
    )(params, x_p)

    # Slice/transpose back to the logical (N, 1) shape; fuses into this jit.
    return y_p[0, :n].reshape(n, 1)


def _init_params():
    """Deterministic init mimicking nn.Linear shapes: linear1(2->2), linear2(2->1)."""
    k = jax.random.PRNGKey(0)
    k1, k2, k3, k4 = jax.random.split(k, 4)
    # PyTorch Linear stores W as (out, in); we keep (in, out) so forward is x @ W.
    bound1 = 1.0 / jnp.sqrt(2.0)
    w1 = jax.random.uniform(k1, (2, 2), jnp.float32, -bound1, bound1)
    b1 = jax.random.uniform(k2, (2,), jnp.float32, -bound1, bound1)
    bound2 = 1.0 / jnp.sqrt(2.0)
    w2 = jax.random.uniform(k3, (2, 1), jnp.float32, -bound2, bound2)
    b2 = jax.random.uniform(k4, (1,), jnp.float32, -bound2, bound2)
    return w1, b1, w2, b2


def _reference_forward(x, w1, b1, w2, b2):
    h = _leaky_relu(x @ w1 + b1)
    return _leaky_relu(h @ w2 + b2)


if __name__ == "__main__":
    # XOR truth-table inputs, same as the PyTorch script's `x = data[:, 0:2]`.
    x = jnp.array([[0.0, 0.0], [0.0, 1.0], [1.0, 0.0], [1.0, 1.0]],
                  dtype=jnp.float32)

    w1, b1, w2, b2 = _init_params()
    params = jax.block_until_ready(pack_params(w1, b1, w2, b2))   # packed once

    y = xornet_forward(x, params)
    y = jax.block_until_ready(y)

    y_ref = _reference_forward(x, w1, b1, w2, b2)
    assert y.shape == (4, 1), y.shape
    assert jnp.allclose(y, y_ref, atol=1e-5, rtol=1e-5), (y, y_ref)

    print("KERNEL_OK")
</pallas_src>

<mosaic_0001>
module attributes {stable_mosaic.version = 11 : i64} {
  func.func @xornet_kernel(%arg0: i32, %arg1: memref<16xf32, #tpu.memory_space<smem>>, %arg2: memref<2x128xf32, #tpu.memory_space<vmem>>, %arg3: memref<1x128xf32, #tpu.memory_space<vmem>>) attributes {dimension_semantics = [#tpu.dimension_semantics<parallel>], iteration_bounds = array<i64: 1>, scalar_prefetch = 0 : i64, scratch_operands = 0 : i64, tpu.core_type = #tpu.core_type<tc>, window_params = [{transform_indices = @transform_0, window_bounds = array<i64: 16>}, {transform_indices = @transform_1, window_bounds = array<i64: 2, 128>}, {transform_indices = @transform_2, window_bounds = array<i64: 1, 128>}]} {
    %c0 = arith.constant 0 : index
    %c0_0 = arith.constant 0 : index
    %0 = vector.load %arg2[%c0, %c0_0] : memref<2x128xf32, #tpu.memory_space<vmem>>, vector<1x128xf32>
    %c1 = arith.constant 1 : index
    %c0_1 = arith.constant 0 : index
    %1 = vector.load %arg2[%c1, %c0_1] : memref<2x128xf32, #tpu.memory_space<vmem>>, vector<1x128xf32>
    %c0_2 = arith.constant 0 : index
    %2 = memref.load %arg1[%c0_2] : memref<16xf32, #tpu.memory_space<smem>>
    %3 = vector.broadcast %2 : f32 to vector<1x128xf32>
    %4 = arith.mulf %3, %0 : vector<1x128xf32>
    %c2 = arith.constant 2 : index
    %5 = memref.load %arg1[%c2] : memref<16xf32, #tpu.memory_space<smem>>
    %6 = vector.broadcast %5 : f32 to vector<1x128xf32>
    %7 = arith.mulf %6, %1 : vector<1x128xf32>
    %8 = arith.addf %4, %7 : vector<1x128xf32>
    %c4 = arith.constant 4 : index
    %9 = memref.load %arg1[%c4] : memref<16xf32, #tpu.memory_space<smem>>
    %10 = vector.broadcast %9 : f32 to vector<1x128xf32>
    %11 = arith.addf %8, %10 : vector<1x128xf32>
    %cst = arith.constant 0.000000e+00 : f32
    %12 = vector.broadcast %cst : f32 to vector<1x128xf32>
    %13 = arith.cmpf ogt, %11, %12 : vector<1x128xf32>
    %cst_3 = arith.constant 0.00999999977 : f32
    %14 = vector.broadcast %cst_3 : f32 to vector<1x128xf32>
    %15 = arith.mulf %14, %11 : vector<1x128xf32>
    %16 = arith.select %13, %11, %15 : vector<1x128xi1>, vector<1x128xf32>
    %c1_4 = arith.constant 1 : index
    %17 = memref.load %arg1[%c1_4] : memref<16xf32, #tpu.memory_space<smem>>
    %18 = vector.broadcast %17 : f32 to vector<1x128xf32>
    %19 = arith.mulf %18, %0 : vector<1x128xf32>
    %c3 = arith.constant 3 : index
    %20 = memref.load %arg1[%c3] : memref<16xf32, #tpu.memory_space<smem>>
    %21 = vector.broadcast %20 : f32 to vector<1x128xf32>
    %22 = arith.mulf %21, %1 : vector<1x128xf32>
    %23 = arith.addf %19, %22 : vector<1x128xf32>
    %c5 = arith.constant 5 : index
    %24 = memref.load %arg1[%c5] : memref<16xf32, #tpu.memory_space<smem>>
    %25 = vector.broadcast %24 : f32 to vector<1x128xf32>
    %26 = arith.addf %23, %25 : vector<1x128xf32>
    %cst_5 = arith.constant 0.000000e+00 : f32
    %27 = vector.broadcast %cst_5 : f32 to vector<1x128xf32>
    %28 = arith.cmpf ogt, %26, %27 : vector<1x128xf32>
    %cst_6 = arith.constant 0.00999999977 : f32
    %29 = vector.broadcast %cst_6 : f32 to vector<1x128xf32>
    %30 = arith.mulf %29, %26 : vector<1x128xf32>
    %31 = arith.select %28, %26, %30 : vector<1x128xi1>, vector<1x128xf32>
    %c6 = arith.constant 6 : index
    %32 = memref.load %arg1[%c6] : memref<16xf32, #tpu.memory_space<smem>>
    %33 = vector.broadcast %32 : f32 to vector<1x128xf32>
    %34 = arith.mulf %33, %16 : vector<1x128xf32>
    %c7 = arith.constant 7 : index
    %35 = memref.load %arg1[%c7] : memref<16xf32, #tpu.memory_space<smem>>
    %36 = vector.broadcast %35 : f32 to vector<1x128xf32>
    %37 = arith.mulf %36, %31 : vector<1x128xf32>
    %38 = arith.addf %34, %37 : vector<1x128xf32>
    %c8 = arith.constant 8 : index
    %39 = memref.load %arg1[%c8] : memref<16xf32, #tpu.memory_space<smem>>
    %40 = vector.broadcast %39 : f32 to vector<1x128xf32>
    %41 = arith.addf %38, %40 : vector<1x128xf32>
    %cst_7 = arith.constant 0.000000e+00 : f32
    %42 = vector.broadcast %cst_7 : f32 to vector<1x128xf32>
    %43 = arith.cmpf ogt, %41, %42 : vector<1x128xf32>
    %cst_8 = arith.constant 0.00999999977 : f32
    %44 = vector.broadcast %cst_8 : f32 to vector<1x128xf32>
    %45 = arith.mulf %44, %41 : vector<1x128xf32>
    %46 = arith.select %43, %41, %45 : vector<1x128xi1>, vector<1x128xf32>
    %c0_9 = arith.constant 0 : index
    %c0_10 = arith.constant 0 : index
    %47 = vector.load %arg3[%c0_9, %c0_10] : memref<1x128xf32, #tpu.memory_space<vmem>>, vector<1x128xf32>
    tpu.vector_store %arg3[%c0_9, %c0_10], %46 {strides = array<i32>} : memref<1x128xf32, #tpu.memory_space<vmem>>, vector<1x128xf32>,
    return
  }
  func.func @transform_0(%arg0: i32) -> i32 {
    %c0_i32 = arith.constant 0 : i32
    %c0_i32_0 = arith.constant 0 : i32
    return %c0_i32 : i32
  }
  func.func @transform_1(%arg0: i32) -> (i32, i32) {
    %c0_i32 = arith.constant 0 : i32
    %c0_i32_0 = arith.constant 0 : i32
    return %c0_i32, %arg0 : i32, i32
  }
  func.func @transform_2(%arg0: i32) -> (i32, i32) {
    %c0_i32 = arith.constant 0 : i32
    %c0_i32_0 = arith.constant 0 : i32
    return %c0_i32, %arg0 : i32, i32
  }
}

</mosaic_0001>

<llo_original>
// kernel: xornet_forward.1
$region0: #{xornet_forward.1}
  #allocation0 [shape = 'u32[]', space=smem, size = 0x4, offset = 0x4, fixed_abs, tag = 'smem constant byte address 0x4 - core index']
  #allocation1 [shape = 'u32[144,128]{1,0:T(1,128)}', space=vmem, size = 0x12000, scoped, tag = 'internal scratch']
  %s0 = inlined_call_operand.vmem [shape: f32[16], index: 0, kind: input, shape index: {}]
  %s1 = inlined_call_operand.vmem [shape: f32[2,128], index: 1, kind: input, shape index: {}]
  %s2 = inlined_call_operand.vmem [shape: f32[1,128], index: 2, kind: output, shape index: {}]
  %s3 = sld [smem:[#allocation0]]
  $region22: #{xornet_forward.1} parent=0
    _
  %s5 = ssub.s32 1, %s3
  %s6 = scalar_select 0, %s5, %s3
  $region1: #{xornet_forward.1} parent=0
    #allocation2 [shape = 'u8[512]{0}', space=smem, size = 0x200, scoped, tag = 'input window, operand 0, single buffered']
    #allocation3 [shape = 's32[1]{0}', space=sflag, size = 0x4, scoped, tag = 'scoped memory for xornet_forward.1']
    %7 = vsyncpa [#allocation3], 0
    // Predicated region
    $region2: #{xornet_forward.1} parent=1 // pred_check
      _
    $region3: #{xornet_forward.1} parent=1 // pred_check_branch
      %9 = sbr.rel (0) target = $region5
    $region4: #{xornet_forward.1} parent=1 // pred_region
      %s11 = ssub.s32 16, 16
      %12 = vsyncadd [#allocation3], %s11
      %s14 = sshll.u32 %s0, 4
      %s15 = int_to_ptr.vmem [resolvable:$true] %s14
      %17 = dma.vmem_to_smem %s15, 16, [#allocation2], [#allocation3]
    $region5: #{xornet_forward.1} parent=1 // pred_fallthru
      _
    // Predicated region
    $region6: #{xornet_forward.1} parent=1 // pred_check
      _
    $region7: #{xornet_forward.1} parent=1 // pred_check_branch
      %19 = sbr.rel (0) target = $region9
    $region8: #{xornet_forward.1} parent=1 // pred_region
      _
    $region9: #{xornet_forward.1} parent=1 // pred_fallthru
      _
    // Predicated region
    $region10: #{xornet_forward.1} parent=1 // pred_check
      _
    $region11: #{xornet_forward.1} parent=1 // pred_check_branch
      %21 = sbr.rel (0) target = $region13
    $region12: #{xornet_forward.1} parent=1 // pred_region
      %22 = dma.done [#allocation3], 16
    $region13: #{xornet_forward.1} parent=1 // pred_fallthru
      _
    %23 = sfence
    %v24 = vld [vmem:[%s1] sm:$0x1]
    %v25 = vld [vmem:[%s1 + $0x1] sm:$0x1]
    %s26 = sld [smem:[#allocation2]]
    %v27 = vstv %s26
    %v28 = vmul.f32 %v27, %v24
    %s29 = sld [smem:[#allocation2 + $0x2]]
    %v30 = vstv %s29
    %v31 = vmul.f32 %v30, %v25
    %v32 = vadd.f32 %v28, %v31
    %s33 = sld [smem:[#allocation2 + $0x4]]
    %v34 = vstv %s33
    %v35 = vadd.f32 %v32, %v34
    %vm36 = vcmp.gt.f32.partialorder %v35, 0.0
    %v37 = vmul.f32 %v35, 0.01
    %v38 = vsel %vm36, %v35, %v37
    %s39 = sld [smem:[#allocation2 + $0x1]]
    %v40 = vstv %s39
    %v41 = vmul.f32 %v40, %v24
    %s42 = sld [smem:[#allocation2 + $0x3]]
    %v43 = vstv %s42
    %v44 = vmul.f32 %v43, %v25
    %v45 = vadd.f32 %v41, %v44
    %s46 = sld [smem:[#allocation2 + $0x5]]
    %v47 = vstv %s46
    %v48 = vadd.f32 %v45, %v47
    %vm49 = vcmp.gt.f32.partialorder %v48, 0.0
    %v50 = vmul.f32 %v48, 0.01
    %v51 = vsel %vm49, %v48, %v50
    %s52 = sld [smem:[#allocation2 + $0x6]]
    %v53 = vstv %s52
    %v54 = vmul.f32 %v53, %v38
    %s55 = sld [smem:[#allocation2 + $0x7]]
    %v56 = vstv %s55
    %v57 = vmul.f32 %v56, %v51
    %v58 = vadd.f32 %v54, %v57
    %s59 = sld [smem:[#allocation2 + $0x8]]
    %v60 = vstv %s59
    %v61 = vadd.f32 %v58, %v60
    %vm62 = vcmp.gt.f32.partialorder %v61, 0.0
    %v63 = vmul.f32 %v61, 0.01
    %v64 = vsel %vm62, %v61, %v63
    %65 = vst [vmem:[%s2] sm:$0x1] %v64
    // Predicated region
    $region14: #{xornet_forward.1} parent=1 // pred_check
      _
    $region15: #{xornet_forward.1} parent=1 // pred_check_branch
      %67 = sbr.rel (0) target = $region17
    $region16: #{xornet_forward.1} parent=1 // pred_region
      _
    $region17: #{xornet_forward.1} parent=1 // pred_fallthru
      _
    // Predicated region
    $region18: #{xornet_forward.1} parent=1 // pred_check
      _
    $region19: #{xornet_forward.1} parent=1 // pred_check_branch
      %69 = sbr.rel (0) target = $region21
    $region20: #{xornet_forward.1} parent=1 // pred_region
      _
    $region21: #{xornet_forward.1} parent=1 // pred_fallthru
      _
    %70 = vsyncpa [#allocation3], 1

</llo_original>
